<compile_context>
chip_gen: v7x
topology: tpu7x:2x2x1
jax: 0.10.0
libtpu: 0.0.40
codegen_flags: <defaults>
</compile_context>

<pallas_src>
import math

import jax
import jax.numpy as jnp
from jax.experimental import pallas as pl
from jax.experimental.pallas import tpu as pltpu


_LANE = 128      # vreg lane width
_SUBLANE = 8     # f32 sublane count


def _round_up(x, m):
    return ((x + m - 1) // m) * m


# ----------------------------------------------------------------------------
# Fused MLP kernel:  o = relu(z @ w1 + b1) @ w2 + b2
#   z : (tb, K)       w1: (K, Hp)   b1: (1, Hp)
#                     w2: (Hp, Np)  b2: (1, Np)     ->  o: (tb, Np)
# Hp/Np are 128-padded so loads of h and stores of o are lane-dense/unmasked.
# ----------------------------------------------------------------------------
def _decoder_kernel(z_ref, w1_ref, b1_ref, w2_ref, b2_ref, o_ref):
    # First Linear + ReLU (f32 accumulation on the MXU, elementwise on VPU).
    h = jnp.dot(z_ref[...], w1_ref[...], preferred_element_type=jnp.float32)
    h = jnp.maximum(h + b1_ref[...], 0.0)
    # Second Linear.
    y = jnp.dot(h.astype(w2_ref.dtype), w2_ref[...],
                preferred_element_type=jnp.float32)
    o_ref[...] = (y + b2_ref[...]).astype(o_ref.dtype)


def decoder_forward(z, params, *, max_tb=1024):
    """Decoder forward pass.  z: (B, latent_dims) -> (B, input_shape)."""
    w1, b1 = params["linear1"]
    w2, b2 = params["linear2"]
    B, K = z.shape
    H = w1.shape[1]
    N = w2.shape[1]
    assert w1.shape == (K, H) and b1.shape == (1, H)
    assert w2.shape == (H, N) and b2.shape == (1, N)

    # --- lane-dense padding of hidden / output feature dims ------------------
    Hp = _round_up(H, _LANE)
    Np = _round_up(N, _LANE)
    w1p = jnp.pad(w1, ((0, 0), (0, Hp - H)))
    b1p = jnp.pad(b1, ((0, 0), (0, Hp - H)))
    w2p = jnp.pad(w2, ((0, Hp - H), (0, Np - N)))
    b2p = jnp.pad(b2, ((0, 0), (0, Np - N)))

    # --- batch tile selection (sublane-aligned, large to amortize per-step
    #     overhead, capped so double-buffered z/out tiles stay tiny in VMEM;
    #     batches > max_tb keep >=2 grid steps for v7x megacore sharding) -----
    B8 = _round_up(B, _SUBLANE)
    if B8 <= max_tb:
        tb = B8
        Bp = B8
    else:
        tb = max_tb                      # multiple of 256 -> good MXU cadence
        Bp = _round_up(B, tb)
    zp = jnp.pad(z, ((0, Bp - B), (0, 0))) if Bp != B else z
    grid = (Bp // tb,)

    out = pl.pallas_call(
        _decoder_kernel,
        out_shape=jax.ShapeDtypeStruct((Bp, Np), z.dtype),
        grid_spec=pltpu.PrefetchScalarGridSpec(
            num_scalar_prefetch=0,
            grid=grid,
            in_specs=[
                pl.BlockSpec((tb, K), lambda i: (i, 0)),    # z: tiled on batch
                pl.BlockSpec((K, Hp), lambda i: (0, 0)),    # w1: VMEM-resident
                pl.BlockSpec((1, Hp), lambda i: (0, 0)),    # b1
                pl.BlockSpec((Hp, Np), lambda i: (0, 0)),   # w2: VMEM-resident
                pl.BlockSpec((1, Np), lambda i: (0, 0)),    # b2
            ],
            out_specs=pl.BlockSpec((tb, Np), lambda i: (i, 0)),
        ),
        compiler_params=pltpu.CompilerParams(
            dimension_semantics=("parallel",)),
    )(zp, w1p, b1p, w2p, b2p)

    # Slice back to the true batch / output width.
    return out[:B, :N]


# ----------------------------------------------------------------------------
# Deterministic PyTorch-style parameter init:
#   nn.Linear default: U(-1/sqrt(fan_in), +1/sqrt(fan_in)) for weight and bias.
# Weights are stored (fan_in, fan_out) so the kernel does x @ w directly
# (numerically identical to PyTorch's x @ W.T with its (out, in) storage).
# ----------------------------------------------------------------------------
def _init_linear(key, fan_in, fan_out):
    bound = 1.0 / math.sqrt(fan_in)
    k1, k2 = jax.random.split(key)
    w = jax.random.uniform(k1, (fan_in, fan_out), jnp.float32, -bound, bound)
    b = jax.random.uniform(k2, (1, fan_out), jnp.float32, -bound, bound)
    return w, b


def build_params(key, input_shape=100, latent_dims=20):
    k1, k2 = jax.random.split(key)
    return {
        "linear1": _init_linear(k1, latent_dims, 50),
        "linear2": _init_linear(k2, 50, input_shape),
    }


def _reference(z, params):
    w1, b1 = params["linear1"]
    w2, b2 = params["linear2"]
    return jnp.maximum(z @ w1 + b1, 0.0) @ w2 + b2


if __name__ == "__main__":
    input_shape = 100
    latent_dims = 20

    key = jax.random.PRNGKey(0)
    kz, kp, kz2 = jax.random.split(key, 3)
    params = build_params(kp, input_shape=input_shape, latent_dims=latent_dims)

    # Small canonical case (batch=2, ragged -> padded to 8 sublanes).
    z = jax.random.normal(kz, (2, latent_dims), jnp.float32)
    out = jax.block_until_ready(decoder_forward(z, params))
    ref = _reference(z, params)
    assert out.shape == (2, input_shape), out.shape
    assert bool(jnp.all(jnp.isfinite(out)))
    assert bool(jnp.allclose(out, ref, atol=1e-5, rtol=1e-5))

    # Ragged multi-tile case (exercises batch padding + grid > 1).
    z2 = jax.random.normal(kz2, (300, latent_dims), jnp.float32)
    out2 = jax.block_until_ready(decoder_forward(z2, params, max_tb=128))
    ref2 = _reference(z2, params)
    assert out2.shape == (300, input_shape), out2.shape
    assert bool(jnp.allclose(out2, ref2, atol=1e-5, rtol=1e-5))

    print("KERNEL_OK")
</pallas_src>

<mosaic_0001>
module attributes {stable_mosaic.version = 11 : i64} {
  func.func @_decoder_kernel(%arg0: i32, %arg1: memref<8x20xf32, #tpu.memory_space<vmem>>, %arg2: memref<20x128xf32, #tpu.memory_space<vmem>>, %arg3: memref<1x128xf32, #tpu.memory_space<vmem>>, %arg4: memref<128x128xf32, #tpu.memory_space<vmem>>, %arg5: memref<1x128xf32, #tpu.memory_space<vmem>>, %arg6: memref<8x128xf32, #tpu.memory_space<vmem>>) attributes {dimension_semantics = [#tpu.dimension_semantics<parallel>], iteration_bounds = array<i64: 1>, scalar_prefetch = 0 : i64, scratch_operands = 0 : i64, tpu.core_type = #tpu.core_type<tc>, window_params = [{transform_indices = @transform_0, window_bounds = array<i64: 8, 20>}, {pipeline_mode = #tpu.pipeline_mode<synchronous>, transform_indices = @transform_1, window_bounds = array<i64: 20, 128>}, {pipeline_mode = #tpu.pipeline_mode<synchronous>, transform_indices = @transform_2, window_bounds = array<i64: 1, 128>}, {pipeline_mode = #tpu.pipeline_mode<synchronous>, transform_indices = @transform_3, window_bounds = array<i64: 128, 128>}, {pipeline_mode = #tpu.pipeline_mode<synchronous>, transform_indices = @transform_4, window_bounds = array<i64: 1, 128>}, {transform_indices = @transform_5, window_bounds = array<i64: 8, 128>}]} {
    %c0 = arith.constant 0 : index
    %c0_0 = arith.constant 0 : index
    %0 = vector.load %arg1[%c0, %c0_0] : memref<8x20xf32, #tpu.memory_space<vmem>>, vector<8x20xf32>
    %c0_1 = arith.constant 0 : index
    %c0_2 = arith.constant 0 : index
    %1 = vector.load %arg2[%c0_1, %c0_2] : memref<20x128xf32, #tpu.memory_space<vmem>>, vector<20x128xf32>
    %cst = arith.constant dense<0.000000e+00> : vector<8x128xf32>
    %2 = tpu.matmul %0, %1, %cst {dimension_numbers = #tpu.dot_dimension_numbers<[1], [0], [0], [1], [0, 0, 1, 1], [], []>} : vector<8x20xf32>, vector<20x128xf32>, vector<8x128xf32> -> vector<8x128xf32>
    %c0_3 = arith.constant 0 : index
    %c0_4 = arith.constant 0 : index
    %3 = vector.load %arg3[%c0_3, %c0_4] : memref<1x128xf32, #tpu.memory_space<vmem>>, vector<1x128xf32>
    %4 = vector.broadcast %3 : vector<1x128xf32> to vector<8x128xf32>
    %5 = arith.addf %2, %4 : vector<8x128xf32>
    %cst_5 = arith.constant 0.000000e+00 : f32
    %6 = vector.broadcast %cst_5 : f32 to vector<8x128xf32>
    %7 = arith.maximumf %5, %6 : vector<8x128xf32>
    %c0_6 = arith.constant 0 : index
    %c0_7 = arith.constant 0 : index
    %8 = vector.load %arg4[%c0_6, %c0_7] : memref<128x128xf32, #tpu.memory_space<vmem>>, vector<128x128xf32>
    %cst_8 = arith.constant dense<0.000000e+00> : vector<8x128xf32>
    %9 = tpu.matmul %7, %8, %cst_8 {dimension_numbers = #tpu.dot_dimension_numbers<[1], [0], [0], [1], [0, 0, 1, 1], [], []>} : vector<8x128xf32>, vector<128x128xf32>, vector<8x128xf32> -> vector<8x128xf32>
    %c0_9 = arith.constant 0 : index
    %c0_10 = arith.constant 0 : index
    %10 = vector.load %arg5[%c0_9, %c0_10] : memref<1x128xf32, #tpu.memory_space<vmem>>, vector<1x128xf32>
    %11 = vector.broadcast %10 : vector<1x128xf32> to vector<8x128xf32>
    %12 = arith.addf %9, %11 : vector<8x128xf32>
    %c0_11 = arith.constant 0 : index
    %c0_12 = arith.constant 0 : index
    %13 = vector.load %arg6[%c0_11, %c0_12] : memref<8x128xf32, #tpu.memory_space<vmem>>, vector<8x128xf32>
    tpu.vector_store %arg6[%c0_11, %c0_12], %12 {strides = array<i32>} : memref<8x128xf32, #tpu.memory_space<vmem>>, vector<8x128xf32>,
    return
  }
  func.func @transform_0(%arg0: i32) -> (i32, i32) {
    %c0_i32 = arith.constant 0 : i32
    %c0_i32_0 = arith.constant 0 : i32
    return %arg0, %c0_i32 : i32, i32
  }
  func.func @transform_1(%arg0: i32) -> (i32, i32) {
    %c0_i32 = arith.constant 0 : i32
    %c0_i32_0 = arith.constant 0 : i32
    %c0_i32_1 = arith.constant 0 : i32
    return %c0_i32, %c0_i32_0 : i32, i32
  }
  func.func @transform_2(%arg0: i32) -> (i32, i32) {
    %c0_i32 = arith.constant 0 : i32
    %c0_i32_0 = arith.constant 0 : i32
    %c0_i32_1 = arith.constant 0 : i32
    return %c0_i32, %c0_i32_0 : i32, i32
  }
  func.func @transform_3(%arg0: i32) -> (i32, i32) {
    %c0_i32 = arith.constant 0 : i32
    %c0_i32_0 = arith.constant 0 : i32
    %c0_i32_1 = arith.constant 0 : i32
    return %c0_i32, %c0_i32_0 : i32, i32
  }
  func.func @transform_4(%arg0: i32) -> (i32, i32) {
    %c0_i32 = arith.constant 0 : i32
    %c0_i32_0 = arith.constant 0 : i32
    %c0_i32_1 = arith.constant 0 : i32
    return %c0_i32, %c0_i32_0 : i32, i32
  }
  func.func @transform_5(%arg0: i32) -> (i32, i32) {
    %c0_i32 = arith.constant 0 : i32
    %c0_i32_0 = arith.constant 0 : i32
    return %arg0, %c0_i32 : i32, i32
  }
}

</mosaic_0001>

<llo_original>
// kernel: tpu_custom_call.1
$region0: #{tpu_custom_call.1}
  #allocation0 [shape = 'u32[]', space=smem, size = 0x4, offset = 0x4, fixed_abs, tag = 'smem constant byte address 0x4 - core index']
  #allocation1 [shape = 'u32[144,128]{1,0:T(1,128)}', space=vmem, size = 0x12000, scoped, tag = 'internal scratch']
  %s0 = inlined_call_operand.hbm [shape: f32[8,20], index: 0, kind: input, shape index: {}]
  %s1 = inlined_call_operand.hbm [shape: f32[20,128], index: 1, kind: input, shape index: {}]
  %s2 = inlined_call_operand.vmem [shape: f32[1,128], index: 2, kind: input, shape index: {}]
  %s3 = inlined_call_operand.hbm [shape: f32[128,128], index: 3, kind: input, shape index: {}]
  %s4 = inlined_call_operand.vmem [shape: f32[1,128], index: 4, kind: input, shape index: {}]
  %s5 = inlined_call_operand.hbm [shape: f32[8,128], index: 5, kind: output, shape index: {}]
  %s6 = sld [smem:[#allocation0]]
  $region42: #{tpu_custom_call.1} parent=0
    _
  %s8 = ssub.s32 1, %s6
  %s9 = scalar_select 0, %s8, %s6
  $region1: #{tpu_custom_call.1} parent=0
    #allocation2 [shape = 'u8[4096]{0}', space=vmem, size = 0x1000, scoped, tag = 'input window, operand 0, single buffered']
    #allocation3 [shape = 's32[1]{0}', space=sflag, size = 0x4, scoped, tag = 'scoped memory for tpu_custom_call.1']
    #allocation4 [shape = 's32[1]{0}', space=sflag, size = 0x4, scoped, tag = 'scoped memory for tpu_custom_call.1']
    #allocation5 [shape = 'u8[12288]{0}', space=vmem, size = 0x3000, scoped, tag = 'input window, operand 1, single buffered']
    #allocation6 [shape = 's32[1]{0}', space=sflag, size = 0x4, scoped, tag = 'scoped memory for tpu_custom_call.1']
    #allocation7 [shape = 'u8[65536]{0}', space=vmem, size = 0x10000, scoped, tag = 'input window, operand 3, single buffered']
    #allocation8 [shape = 'u8[4096]{0}', space=vmem, size = 0x1000, scoped, tag = 'output window, operand 0, single buffered']
    %10 = vsyncpa [#allocation3], 0
    %11 = vsyncpa [#allocation6], 0
    %12 = vsyncpa [#allocation4], 0
    // Predicated region
    $region2: #{tpu_custom_call.1} parent=1 // pred_check
      _
    $region3: #{tpu_custom_call.1} parent=1 // pred_check_branch
      %14 = sbr.rel (0) target = $region5
    $region4: #{tpu_custom_call.1} parent=1 // pred_region
      %s16 = ssub.s32 128, 128
      %17 = vsyncadd [#allocation3], %s16
      %s19 = sshll.u32 [#allocation2], 4
      %s20 = int_to_ptr.vmem [resolvable:$true] %s19
      %22 = dma.hbm_to_vmem [thread:$0]  %s0, 128, %s20, [#allocation3]
    $region5: #{tpu_custom_call.1} parent=1 // pred_fallthru
      _
    // Predicated region
    $region6: #{tpu_custom_call.1} parent=1 // pred_check
      _
    $region7: #{tpu_custom_call.1} parent=1 // pred_check_branch
      %24 = sbr.rel (0) target = $region9
    $region8: #{tpu_custom_call.1} parent=1 // pred_region
      %s26 = ssub.s32 384, 384
      %27 = vsyncadd [#allocation6], %s26
      %s28 = sshll.u32 [#allocation5], 4
      %s29 = int_to_ptr.vmem [resolvable:$true] %s28
      %34 = dma.hbm_to_vmem [thread:$0]  %s1, 384, %s29, [#allocation6], 128, 128, 8
    $region9: #{tpu_custom_call.1} parent=1 // pred_fallthru
      _
    // Predicated region
    $region10: #{tpu_custom_call.1} parent=1 // pred_check
      _
    $region11: #{tpu_custom_call.1} parent=1 // pred_check_branch
      %36 = sbr.rel (0) target = $region13
    $region12: #{tpu_custom_call.1} parent=1 // pred_region
      _
    $region13: #{tpu_custom_call.1} parent=1 // pred_fallthru
      _
    // Predicated region
    $region14: #{tpu_custom_call.1} parent=1 // pred_check
      _
    $region15: #{tpu_custom_call.1} parent=1 // pred_check_branch
      %38 = sbr.rel (0) target = $region17
    $region16: #{tpu_custom_call.1} parent=1 // pred_region
      %s40 = ssub.s32 2048, 2048
      %41 = vsyncadd [#allocation6], %s40
      %s42 = sshll.u32 [#allocation7], 4
      %s43 = int_to_ptr.vmem [resolvable:$true] %s42
      %48 = dma.hbm_to_vmem [thread:$0]  %s3, 2048, %s43, [#allocation6], 128, 128, 8
    $region17: #{tpu_custom_call.1} parent=1 // pred_fallthru
      _
    // Predicated region
    $region18: #{tpu_custom_call.1} parent=1 // pred_check
      _
    $region19: #{tpu_custom_call.1} parent=1 // pred_check_branch
      %50 = sbr.rel (0) target = $region21
    $region20: #{tpu_custom_call.1} parent=1 // pred_region
      _
    $region21: #{tpu_custom_call.1} parent=1 // pred_fallthru
      _
    // Predicated region
    $region22: #{tpu_custom_call.1} parent=1 // pred_check
      _
    $region23: #{tpu_custom_call.1} parent=1 // pred_check_branch
      %52 = sbr.rel (0) target = $region25
    $region24: #{tpu_custom_call.1} parent=1 // pred_region
      %53 = dma.done [#allocation3], 128
    $region25: #{tpu_custom_call.1} parent=1 // pred_fallthru
      _
    // Predicated region
    $region26: #{tpu_custom_call.1} parent=1 // pred_check
      _
    $region27: #{tpu_custom_call.1} parent=1 // pred_check_branch
      %55 = sbr.rel (0) target = $region29
    $region28: #{tpu_custom_call.1} parent=1 // pred_region
      %56 = dma.done [#allocation6], 384
    $region29: #{tpu_custom_call.1} parent=1 // pred_fallthru
      _
    // Predicated region
    $region30: #{tpu_custom_call.1} parent=1 // pred_check
      _
    $region31: #{tpu_custom_call.1} parent=1 // pred_check_branch
      %58 = sbr.rel (0) target = $region33
    $region32: #{tpu_custom_call.1} parent=1 // pred_region
      %59 = dma.done [#allocation6], 2048
    $region33: #{tpu_custom_call.1} parent=1 // pred_fallthru
      _
    %v60 = vld [vmem:[#allocation2] sm:$0xff]
    %v61 = vld [vmem:[#allocation5] sm:$0xff]
    %v62 = vld [vmem:[#allocation5 + $0x8] sm:$0xff]
    %v63 = vld [vmem:[#allocation5 + $0x10] sm:$0xf]
    %v64 = vld [vmem:[%s2] sm:$0x1]
    %v66 = vlaneseq
    %v67 = vshrl.u32 %v66, 7
    %v68 = vsub.s32 0, %v67
    %v69 = vrot.slane %v64, %v68
    %vm71 = vcmask 162816
    %v73 = vsel %vm71, %v60, 0
    %vm75 = vcmask 1043456
    %v77 = vsel %vm75, %v63, 0
    %79 = vmatprep.subr.mxu0 0.0
    %80 = vmatpush1.msra.mxu0 %v61
    %81 = vmatprep.subr.mxu0 0.0
    %82 = vmatpush1.msra.mxu0 %v62
    %83 = vmatprep.subr.mxu0 0.0
    %84 = vmatpush1.msra.mxu0 %v77
    %85 = vmatprep.subr.mxu0 0.0
    %86 = vmatpush1.msra.mxu0 0.0
    %87 = vmatprep.subr.mxu0 0.0
    %88 = vmatpush1.msra.mxu0 0.0
    %89 = vmatprep.subr.mxu0 0.0
    %90 = vmatpush1.msra.mxu0 0.0
    %91 = vmatprep.subr.mxu0 0.0
    %92 = vmatpush1.msra.mxu0 0.0
    %93 = vmatprep.subr.mxu0 0.0
    %94 = vmatpush1.msra.mxu0 0.0
    %95 = vmatprep.subr.mxu0 0.0
    %96 = vmatpush1.msra.mxu0 0.0
    %97 = vmatprep.subr.mxu0 0.0
    %98 = vmatpush1.msra.mxu0 0.0
    %99 = vmatprep.subr.mxu0 0.0
    %100 = vmatpush1.msra.mxu0 0.0
    %101 = vmatprep.subr.mxu0 0.0
    %102 = vmatpush1.msra.mxu0 0.0
    %103 = vmatprep.subr.mxu0 0.0
    %104 = vmatpush1.msra.mxu0 0.0
    %105 = vmatprep.subr.mxu0 0.0
    %106 = vmatpush1.msra.mxu0 0.0
    %107 = vmatprep.subr.mxu0 0.0
    %108 = vmatpush1.msra.mxu0 0.0
    %109 = vmatprep.subr.mxu0 0.0
    %110 = vmatpush1.msra.mxu0 0.0
    %111 = vmatprep.subr.mxu0 0.0
    %112 = vmatpush1.msra.mxu0 0.0
    %113 = vmatprep.subr.mxu0 0.0
    %114 = vmatpush1.msra.mxu0 0.0
    %115 = vmatprep.subr.mxu0 0.0
    %116 = vmatpush1.msra.mxu0 0.0
    %117 = vmatprep.subr.mxu0 0.0
    %118 = vmatpush1.msra.mxu0 0.0
    %119 = vmatprep.subr.mxu0 0.0
    %120 = vmatpush1.msra.mxu0 0.0
    %121 = vmatprep.subr.mxu0 0.0
    %122 = vmatpush1.msra.mxu0 0.0
    %123 = vmatprep.subr.mxu0 0.0
    %124 = vmatpush1.msra.mxu0 0.0
    %125 = vmatprep.subr.mxu0 0.0
    %126 = vmatpush1.msra.mxu0 0.0
    %127 = vmatprep.subr.mxu0 0.0
    %128 = vmatpush1.msra.mxu0 0.0
    %129 = vmatprep.subr.mxu0 0.0
    %130 = vmatpush1.msra.mxu0 0.0
    %131 = vmatprep.subr.mxu0 0.0
    %132 = vmatpush1.msra.mxu0 0.0
    %133 = vmatprep.subr.mxu0 0.0
    %134 = vmatpush1.msra.mxu0 0.0
    %135 = vmatprep.subr.mxu0 0.0
    %136 = vmatpush1.msra.mxu0 0.0
    %137 = vmatprep.subr.mxu0 0.0
    %138 = vmatpush1.msra.mxu0 0.0
    %139 = vmatprep.subr.mxu0 0.0
    %140 = vmatpush1.msra.mxu0 0.0
    %141 = vmatprep.subr.mxu0 0.0
    %142 = vmatpush1.msra.mxu0 0.0
    %143 = vmatprep.mubr.f32.mxu0 0.0
    %144 = vmatmul.mubr.f32.gmra.mrb[0].mxu0 %v73
    %v145 = vpop.f32.mrb[0].mxu0
    %v146 = vadd.f32 %v69, %v145
    %v147 = vpop.f32.mrb[0].mxu0
    %148 = vdwg.mxu0
    %v149 = vmax.f32 %v146, 0.0
    %v150 = vld [vmem:[#allocation7] sm:$0xff]
    %v151 = vld [vmem:[#allocation7 + $0x8] sm:$0xff]
    %v152 = vld [vmem:[#allocation7 + $0x10] sm:$0xff]
    %v153 = vld [vmem:[#allocation7 + $0x18] sm:$0xff]
    %v154 = vld [vmem:[#allocation7 + $0x20] sm:$0xff]
    %v155 = vld [vmem:[#allocation7 + $0x28] sm:$0xff]
    %v156 = vld [vmem:[#allocation7 + $0x30] sm:$0xff]
    %v157 = vld [vmem:[#allocation7 + $0x38] sm:$0xff]
    %v158 = vld [vmem:[#allocation7 + $0x40] sm:$0xff]
    %v159 = vld [vmem:[#allocation7 + $0x48] sm:$0xff]
    %v160 = vld [vmem:[#allocation7 + $0x50] sm:$0xff]
    %v161 = vld [vmem:[#allocation7 + $0x58] sm:$0xff]
    %v162 = vld [vmem:[#allocation7 + $0x60] sm:$0xff]
    %v163 = vld [vmem:[#allocation7 + $0x68] sm:$0xff]
    %v164 = vld [vmem:[#allocation7 + $0x70] sm:$0xff]
    %v165 = vld [vmem:[#allocation7 + $0x78] sm:$0xff]
    %v166 = vld [vmem:[%s4] sm:$0x1]
    %v168 = vlaneseq
    %v169 = vshrl.u32 %v168, 7
    %v170 = vsub.s32 0, %v169
    %v171 = vrot.slane %v166, %v170
    %173 = vmatprep.subr.mxu0 0.0
    %174 = vmatpush1.msra.mxu0 %v150
    %175 = vmatprep.subr.mxu0 0.0
    %176 = vmatpush1.msra.mxu0 %v151
    %177 = vmatprep.subr.mxu0 0.0
    %178 = vmatpush1.msra.mxu0 %v152
    %179 = vmatprep.subr.mxu0 0.0
    %180 = vmatpush1.msra.mxu0 %v153
    %181 = vmatprep.subr.mxu0 0.0
    %182 = vmatpush1.msra.mxu0 %v154
    %183 = vmatprep.subr.mxu0 0.0
    %184 = vmatpush1.msra.mxu0 %v155
    %185 = vmatprep.subr.mxu0 0.0
    %186 = vmatpush1.msra.mxu0 %v156
    %187 = vmatprep.subr.mxu0 0.0
    %188 = vmatpush1.msra.mxu0 %v157
    %189 = vmatprep.subr.mxu0 0.0
    %190 = vmatpush1.msra.mxu0 %v158
    %191 = vmatprep.subr.mxu0 0.0
    %192 = vmatpush1.msra.mxu0 %v159
    %193 = vmatprep.subr.mxu0 0.0
    %194 = vmatpush1.msra.mxu0 %v160
    %195 = vmatprep.subr.mxu0 0.0
    %196 = vmatpush1.msra.mxu0 %v161
    %197 = vmatprep.subr.mxu0 0.0
    %198 = vmatpush1.msra.mxu0 %v162
    %199 = vmatprep.subr.mxu0 0.0
    %200 = vmatpush1.msra.mxu0 %v163
    %201 = vmatprep.subr.mxu0 0.0
    %202 = vmatpush1.msra.mxu0 %v164
    %203 = vmatprep.subr.mxu0 0.0
    %204 = vmatpush1.msra.mxu0 %v165
    %205 = vmatprep.subr.mxu0 0.0
    %206 = vmatpush1.msra.mxu0 0.0
    %207 = vmatprep.subr.mxu0 0.0
    %208 = vmatpush1.msra.mxu0 0.0
    %209 = vmatprep.subr.mxu0 0.0
    %210 = vmatpush1.msra.mxu0 0.0
    %211 = vmatprep.subr.mxu0 0.0
    %212 = vmatpush1.msra.mxu0 0.0
    %213 = vmatprep.subr.mxu0 0.0
    %214 = vmatpush1.msra.mxu0 0.0
    %215 = vmatprep.subr.mxu0 0.0
    %216 = vmatpush1.msra.mxu0 0.0
    %217 = vmatprep.subr.mxu0 0.0
    %218 = vmatpush1.msra.mxu0 0.0
    %219 = vmatprep.subr.mxu0 0.0
    %220 = vmatpush1.msra.mxu0 0.0
    %221 = vmatprep.subr.mxu0 0.0
    %222 = vmatpush1.msra.mxu0 0.0
    %223 = vmatprep.subr.mxu0 0.0
    %224 = vmatpush1.msra.mxu0 0.0
    %225 = vmatprep.subr.mxu0 0.0
    %226 = vmatpush1.msra.mxu0 0.0
    %227 = vmatprep.subr.mxu0 0.0
    %228 = vmatpush1.msra.mxu0 0.0
    %229 = vmatprep.subr.mxu0 0.0
    %230 = vmatpush1.msra.mxu0 0.0
    %231 = vmatprep.subr.mxu0 0.0
    %232 = vmatpush1.msra.mxu0 0.0
    %233 = vmatprep.subr.mxu0 0.0
    %234 = vmatpush1.msra.mxu0 0.0
    %235 = vmatprep.subr.mxu0 0.0
    %236 = vmatpush1.msra.mxu0 0.0
    %237 = vmatprep.mubr.f32.mxu0 0.0
    %238 = vmatmul.mubr.f32.gmra.mrb[0].mxu0 %v149
    %v239 = vpop.f32.mrb[0].mxu0
    %v240 = vadd.f32 %v171, %v239
    %v241 = vpop.f32.mrb[0].mxu0
    %242 = vdwg.mxu0
    %243 = vst [vmem:[#allocation8] sm:$0xff] %v240
    // Predicated region
    $region34: #{tpu_custom_call.1} parent=1 // pred_check
      _
    $region35: #{tpu_custom_call.1} parent=1 // pred_check_branch
      %245 = sbr.rel (0) target = $region37
    $region36: #{tpu_custom_call.1} parent=1 // pred_region
      %s247 = ssub.s32 128, 128
      %248 = vsyncadd [#allocation4], %s247
      %s250 = sshll.u32 [#allocation8], 4
      %s251 = int_to_ptr.vmem [resolvable:$true] %s250
      %253 = dma.vmem_to_hbm [thread:$0]  %s251, 128, %s5, [#allocation4]
    $region37: #{tpu_custom_call.1} parent=1 // pred_fallthru
      _
    // Predicated region
    $region38: #{tpu_custom_call.1} parent=1 // pred_check
      _
    $region39: #{tpu_custom_call.1} parent=1 // pred_check_branch
      %255 = sbr.rel (0) target = $region41
    $region40: #{tpu_custom_call.1} parent=1 // pred_region
      %256 = dma.done [#allocation4], 128
    $region41: #{tpu_custom_call.1} parent=1 // pred_fallthru
      _
    %257 = vsyncpa [#allocation3], 1
    %258 = vsyncpa [#allocation6], 1
    %259 = vsyncpa [#allocation4], 1

</llo_original>
